<compile_context>
chip_gen: v5e
topology: v5e:2x2
jax: 0.10.0
libtpu: 0.0.40
codegen_flags: <defaults>
</compile_context>

<pallas_src>
import jax
import jax.numpy as jnp
from jax.experimental import pallas as pl
from jax.experimental.pallas import tpu as pltpu

HID1 = 128
HID2 = 256

# Max rows per grid step.  At 2048 rows the per-step VMEM footprint
# (x 128 KiB + out 32 KiB, double-buffered, + ~3 MiB f32/bf16 intermediates)
# is well under the 32 MiB scoped limit on every generation.
TILE_B_MAX = 2048
# Below this batch size we don't bother splitting into multiple tiles.
MIN_SPLIT_B = 256


def _round_up(n, m):
    return ((n + m - 1) // m) * m


def dqn_kernel(x_ref, w1_ref, b1_ref, w2_ref, b2_ref, w3_ref, b3_ref, o_ref):
    # x arrives as f32; cast to bf16 in-kernel (VPU, hidden under DMA/MXU).
    x = x_ref[...].astype(jnp.bfloat16)
    # fc1 + relu (bf16 operands, f32 accumulate, f32 epilogue)
    h1 = jnp.dot(x, w1_ref[...], preferred_element_type=jnp.float32)
    h1 = jnp.maximum(h1 + b1_ref[...], 0.0).astype(jnp.bfloat16)
    # fc2 + relu
    h2 = jnp.dot(h1, w2_ref[...], preferred_element_type=jnp.float32)
    h2 = jnp.maximum(h2 + b2_ref[...], 0.0).astype(jnp.bfloat16)
    # fc3 (no activation); output width == actions (narrow, masked vst — the
    # write stream is now tiny compared to the x read stream).
    out = jnp.dot(h2, w3_ref[...], preferred_element_type=jnp.float32)
    o_ref[...] = (out + b3_ref[...]).astype(o_ref.dtype)


def prepare_params(params):
    """One-time parameter prep: bf16 weights (MXU operands), f32 biases.

    Do this once per parameter update, not per forward call.
    """
    return {
        "w1": params["w1"].astype(jnp.bfloat16),
        "w2": params["w2"].astype(jnp.bfloat16),
        "w3": params["w3"].astype(jnp.bfloat16),
        "b1": params["b1"].astype(jnp.float32),
        "b2": params["b2"].astype(jnp.float32),
        "b3": params["b3"].astype(jnp.float32),
    }


def _choose_tiling(B):
    """Pick (tile_b, b_pad, n_tiles) so padding waste stays tiny and, for
    moderate/large B, there are a few grid steps to pipeline / shard."""
    n_tiles = max(pl.cdiv(B, TILE_B_MAX), min(4, pl.cdiv(B, MIN_SPLIT_B)))
    n_tiles = max(n_tiles, 1)
    tile_b = _round_up(pl.cdiv(B, n_tiles), 8)
    b_pad = n_tiles * tile_b
    return tile_b, b_pad, n_tiles


def dqn_forward(x, prepared):
    """x: [B, inputs] float32. prepared: output of prepare_params()."""
    B, inputs = x.shape
    w1, w2, w3 = prepared["w1"], prepared["w2"], prepared["w3"]
    b1, b2, b3 = prepared["b1"], prepared["b2"], prepared["b3"]
    actions = w3.shape[1]

    tile_b, b_pad, n_tiles = _choose_tiling(B)

    # Only batch padding (f32 x; the bf16 cast happens inside the kernel).
    x_p = x if b_pad == B else jnp.pad(x, ((0, b_pad - B), (0, 0)))

    flops = 2 * b_pad * (inputs * HID1 + HID1 * HID2 + HID2 * actions)
    bytes_accessed = (
        x_p.size * 4
        + w1.size * 2 + w2.size * 2 + w3.size * 2
        + b1.size * 4 + b2.size * 4 + b3.size * 4
        + b_pad * actions * 4
    )

    out = pl.pallas_call(
        dqn_kernel,
        out_shape=jax.ShapeDtypeStruct((b_pad, actions), jnp.float32),
        grid_spec=pltpu.PrefetchScalarGridSpec(
            num_scalar_prefetch=0,
            grid=(n_tiles,),
            in_specs=[
                # x: tiled over the batch grid axis.
                pl.BlockSpec((tile_b, inputs), lambda i: (i, 0)),
                # Weights / biases: full-array blocks, resident across steps.
                pl.BlockSpec(w1.shape, lambda i: (0, 0)),
                pl.BlockSpec(b1.shape, lambda i: (0, 0)),
                pl.BlockSpec(w2.shape, lambda i: (0, 0)),
                pl.BlockSpec(b2.shape, lambda i: (0, 0)),
                pl.BlockSpec(w3.shape, lambda i: (0, 0)),
                pl.BlockSpec(b3.shape, lambda i: (0, 0)),
            ],
            # Narrow (actions-wide) output block: last dim equals the full
            # array dim, so the (8,128) rule is satisfied; write bytes shrink
            # ~32x vs the old 128-lane f32 padded store.
            out_specs=pl.BlockSpec((tile_b, actions), lambda i: (i, 0)),
        ),
        compiler_params=pltpu.CompilerParams(
            dimension_semantics=("parallel",),
            vmem_limit_bytes=32 * 1024 * 1024,
        ),
        cost_estimate=pl.CostEstimate(
            flops=flops, transcendentals=0, bytes_accessed=bytes_accessed),
    )(x_p, w1, b1, w2, b2, w3, b3)

    # Strip batch padding (no action padding anymore).
    return out[:B]


def init_params(key, inputs, actions):
    """Deterministic init mirroring PyTorch nn.Linear default (U[-1/sqrt(fan_in), +])."""
    ks = jax.random.split(key, 6)

    def linear(kw, kb, fan_in, fan_out):
        bound = 1.0 / jnp.sqrt(jnp.float32(fan_in))
        # stored as [in, out] (transposed vs. PyTorch's [out, in]) for x @ W
        w = jax.random.uniform(kw, (fan_in, fan_out), jnp.float32, -bound, bound)
        b = jax.random.uniform(kb, (1, fan_out), jnp.float32, -bound, bound)
        return w, b

    w1, b1 = linear(ks[0], ks[1], inputs, HID1)
    w2, b2 = linear(ks[2], ks[3], HID1, HID2)
    w3, b3 = linear(ks[4], ks[5], HID2, actions)
    return {"w1": w1, "b1": b1, "w2": w2, "b2": b2, "w3": w3, "b3": b3}


if __name__ == "__main__":
    key = jax.random.PRNGKey(0)
    k_x, k_p = jax.random.split(key)

    batch, inputs, actions = 8, 16, 4
    x = jax.random.normal(k_x, (batch, inputs), jnp.float32)
    params = init_params(k_p, inputs, actions)
    prepared = prepare_params(params)   # one-time prep, outside the fwd path

    out = dqn_forward(x, prepared)
    jax.block_until_ready(out)
    assert out.shape == (batch, actions)

    # Reference with the same bf16-operand / f32-accumulate recipe.
    xb = x.astype(jnp.bfloat16)
    w1b = params["w1"].astype(jnp.bfloat16)
    w2b = params["w2"].astype(jnp.bfloat16)
    w3b = params["w3"].astype(jnp.bfloat16)
    h1 = jnp.maximum(
        jnp.dot(xb, w1b, preferred_element_type=jnp.float32) + params["b1"], 0.0)
    h2 = jnp.maximum(
        jnp.dot(h1.astype(jnp.bfloat16), w2b, preferred_element_type=jnp.float32)
        + params["b2"], 0.0)
    ref_bf16 = (jnp.dot(h2.astype(jnp.bfloat16), w3b,
                        preferred_element_type=jnp.float32) + params["b3"])
    assert jnp.allclose(out, ref_bf16, atol=1e-4, rtol=1e-4)

    # Loose sanity check against the pure-f32 math of the PyTorch module.
    # (bf16 MXU operands lose some precision vs the f32 nn.Linear reference.)
    h1f = jnp.maximum(x @ params["w1"] + params["b1"], 0.0)
    h2f = jnp.maximum(h1f @ params["w2"] + params["b2"], 0.0)
    ref_f32 = h2f @ params["w3"] + params["b3"]
    assert jnp.allclose(out, ref_f32, atol=1e-1, rtol=1e-1)

    print("KERNEL_OK")
</pallas_src>

<mosaic_0001>
module attributes {stable_mosaic.version = 11 : i64} {
  func.func @dqn_kernel(%arg0: i32, %arg1: memref<8x16xf32, #tpu.memory_space<vmem>>, %arg2: memref<16x128xbf16, #tpu.memory_space<vmem>>, %arg3: memref<1x128xf32, #tpu.memory_space<vmem>>, %arg4: memref<128x256xbf16, #tpu.memory_space<vmem>>, %arg5: memref<1x256xf32, #tpu.memory_space<vmem>>, %arg6: memref<256x4xbf16, #tpu.memory_space<vmem>>, %arg7: memref<1x4xf32, #tpu.memory_space<vmem>>, %arg8: memref<8x4xf32, #tpu.memory_space<vmem>>) attributes {dimension_semantics = [#tpu.dimension_semantics<parallel>], iteration_bounds = array<i64: 1>, scalar_prefetch = 0 : i64, scratch_operands = 0 : i64, tpu.core_type = #tpu.core_type<tc>, window_params = [{transform_indices = @transform_0, window_bounds = array<i64: 8, 16>}, {pipeline_mode = #tpu.pipeline_mode<synchronous>, transform_indices = @transform_1, window_bounds = array<i64: 16, 128>}, {pipeline_mode = #tpu.pipeline_mode<synchronous>, transform_indices = @transform_2, window_bounds = array<i64: 1, 128>}, {pipeline_mode = #tpu.pipeline_mode<synchronous>, transform_indices = @transform_3, window_bounds = array<i64: 128, 256>}, {pipeline_mode = #tpu.pipeline_mode<synchronous>, transform_indices = @transform_4, window_bounds = array<i64: 1, 256>}, {pipeline_mode = #tpu.pipeline_mode<synchronous>, transform_indices = @transform_5, window_bounds = array<i64: 256, 4>}, {pipeline_mode = #tpu.pipeline_mode<synchronous>, transform_indices = @transform_6, window_bounds = array<i64: 1, 4>}, {transform_indices = @transform_7, window_bounds = array<i64: 8, 4>}]} {
    %c0 = arith.constant 0 : index
    %c0_0 = arith.constant 0 : index
    %0 = vector.load %arg1[%c0, %c0_0] : memref<8x16xf32, #tpu.memory_space<vmem>>, vector<8x16xf32>
    %1 = arith.truncf %0 : vector<8x16xf32> to vector<8x16xbf16>
    %c0_1 = arith.constant 0 : index
    %c0_2 = arith.constant 0 : index
    %2 = vector.load %arg2[%c0_1, %c0_2] : memref<16x128xbf16, #tpu.memory_space<vmem>>, vector<16x128xbf16>
    %cst = arith.constant dense<0.000000e+00> : vector<8x128xf32>
    %3 = tpu.matmul %1, %2, %cst {dimension_numbers = #tpu.dot_dimension_numbers<[1], [0], [0], [1], [0, 0, 1, 1], [], []>} : vector<8x16xbf16>, vector<16x128xbf16>, vector<8x128xf32> -> vector<8x128xf32>
    %c0_3 = arith.constant 0 : index
    %c0_4 = arith.constant 0 : index
    %4 = vector.load %arg3[%c0_3, %c0_4] : memref<1x128xf32, #tpu.memory_space<vmem>>, vector<1x128xf32>
    %5 = vector.broadcast %4 : vector<1x128xf32> to vector<8x128xf32>
    %6 = arith.addf %3, %5 : vector<8x128xf32>
    %cst_5 = arith.constant 0.000000e+00 : f32
    %7 = vector.broadcast %cst_5 : f32 to vector<8x128xf32>
    %8 = arith.maximumf %6, %7 : vector<8x128xf32>
    %9 = arith.truncf %8 : vector<8x128xf32> to vector<8x128xbf16>
    %c0_6 = arith.constant 0 : index
    %c0_7 = arith.constant 0 : index
    %10 = vector.load %arg4[%c0_6, %c0_7] : memref<128x256xbf16, #tpu.memory_space<vmem>>, vector<128x256xbf16>
    %cst_8 = arith.constant dense<0.000000e+00> : vector<8x256xf32>
    %11 = tpu.matmul %9, %10, %cst_8 {dimension_numbers = #tpu.dot_dimension_numbers<[1], [0], [0], [1], [0, 0, 1, 1], [], []>} : vector<8x128xbf16>, vector<128x256xbf16>, vector<8x256xf32> -> vector<8x256xf32>
    %c0_9 = arith.constant 0 : index
    %c0_10 = arith.constant 0 : index
    %12 = vector.load %arg5[%c0_9, %c0_10] : memref<1x256xf32, #tpu.memory_space<vmem>>, vector<1x256xf32>
    %13 = vector.broadcast %12 : vector<1x256xf32> to vector<8x256xf32>
    %14 = arith.addf %11, %13 : vector<8x256xf32>
    %cst_11 = arith.constant 0.000000e+00 : f32
    %15 = vector.broadcast %cst_11 : f32 to vector<8x256xf32>
    %16 = arith.maximumf %14, %15 : vector<8x256xf32>
    %17 = arith.truncf %16 : vector<8x256xf32> to vector<8x256xbf16>
    %c0_12 = arith.constant 0 : index
    %c0_13 = arith.constant 0 : index
    %18 = vector.load %arg6[%c0_12, %c0_13] : memref<256x4xbf16, #tpu.memory_space<vmem>>, vector<256x4xbf16>
    %cst_14 = arith.constant dense<0.000000e+00> : vector<8x4xf32>
    %19 = tpu.matmul %17, %18, %cst_14 {dimension_numbers = #tpu.dot_dimension_numbers<[1], [0], [0], [1], [0, 0, 1, 1], [], []>} : vector<8x256xbf16>, vector<256x4xbf16>, vector<8x4xf32> -> vector<8x4xf32>
    %c0_15 = arith.constant 0 : index
    %c0_16 = arith.constant 0 : index
    %20 = vector.load %arg7[%c0_15, %c0_16] : memref<1x4xf32, #tpu.memory_space<vmem>>, vector<1x4xf32>
    %21 = vector.broadcast %20 : vector<1x4xf32> to vector<8x4xf32>
    %22 = arith.addf %19, %21 : vector<8x4xf32>
    %c0_17 = arith.constant 0 : index
    %c0_18 = arith.constant 0 : index
    %23 = vector.load %arg8[%c0_17, %c0_18] : memref<8x4xf32, #tpu.memory_space<vmem>>, vector<8x4xf32>
    tpu.vector_store %arg8[%c0_17, %c0_18], %22 {strides = array<i32>} : memref<8x4xf32, #tpu.memory_space<vmem>>, vector<8x4xf32>,
    return
  }
  func.func @transform_0(%arg0: i32) -> (i32, i32) {
    %c0_i32 = arith.constant 0 : i32
    %c0_i32_0 = arith.constant 0 : i32
    return %arg0, %c0_i32 : i32, i32
  }
  func.func @transform_1(%arg0: i32) -> (i32, i32) {
    %c0_i32 = arith.constant 0 : i32
    %c0_i32_0 = arith.constant 0 : i32
    %c0_i32_1 = arith.constant 0 : i32
    return %c0_i32, %c0_i32_0 : i32, i32
  }
  func.func @transform_2(%arg0: i32) -> (i32, i32) {
    %c0_i32 = arith.constant 0 : i32
    %c0_i32_0 = arith.constant 0 : i32
    %c0_i32_1 = arith.constant 0 : i32
    return %c0_i32, %c0_i32_0 : i32, i32
  }
  func.func @transform_3(%arg0: i32) -> (i32, i32) {
    %c0_i32 = arith.constant 0 : i32
    %c0_i32_0 = arith.constant 0 : i32
    %c0_i32_1 = arith.constant 0 : i32
    return %c0_i32, %c0_i32_0 : i32, i32
  }
  func.func @transform_4(%arg0: i32) -> (i32, i32) {
    %c0_i32 = arith.constant 0 : i32
    %c0_i32_0 = arith.constant 0 : i32
    %c0_i32_1 = arith.constant 0 : i32
    return %c0_i32, %c0_i32_0 : i32, i32
  }
  func.func @transform_5(%arg0: i32) -> (i32, i32) {
    %c0_i32 = arith.constant 0 : i32
    %c0_i32_0 = arith.constant 0 : i32
    %c0_i32_1 = arith.constant 0 : i32
    return %c0_i32, %c0_i32_0 : i32, i32
  }
  func.func @transform_6(%arg0: i32) -> (i32, i32) {
    %c0_i32 = arith.constant 0 : i32
    %c0_i32_0 = arith.constant 0 : i32
    %c0_i32_1 = arith.constant 0 : i32
    return %c0_i32, %c0_i32_0 : i32, i32
  }
  func.func @transform_7(%arg0: i32) -> (i32, i32) {
    %c0_i32 = arith.constant 0 : i32
    %c0_i32_0 = arith.constant 0 : i32
    return %arg0, %c0_i32 : i32, i32
  }
}

</mosaic_0001>

<llo_original>
// kernel: tpu_custom_call.1
$region0: #{tpu_custom_call.1}
  #allocation0 [shape = 'u32[]', space=smem, size = 0x4, offset = 0x4, fixed_abs, tag = 'smem constant byte address 0x4 - core index']
  #allocation1 [shape = 'u32[72,128]{1,0:T(1,128)}', space=vmem, size = 0x9000, scoped, tag = 'internal scratch']
  %s0 = inlined_call_operand.hbm [shape: f32[8,16], index: 0, kind: input, shape index: {}]
  %s1 = inlined_call_operand.hbm [shape: bf16[16,128], index: 1, kind: input, shape index: {}]
  %s2 = inlined_call_operand.vmem [shape: f32[1,128], index: 2, kind: input, shape index: {}]
  %s3 = inlined_call_operand.vmem [shape: bf16[128,256], index: 3, kind: input, shape index: {}]
  %s4 = inlined_call_operand.vmem [shape: f32[1,256], index: 4, kind: input, shape index: {}]
  %s5 = inlined_call_operand.vmem [shape: bf16[256,4], index: 5, kind: input, shape index: {}]
  %s6 = inlined_call_operand.vmem [shape: f32[1,4], index: 6, kind: input, shape index: {}]
  %s7 = inlined_call_operand.vmem [shape: f32[8,4], index: 7, kind: output, shape index: {}]
  %s8 = sld [smem:[#allocation0]]
  $region46: #{tpu_custom_call.1} parent=0
    _
  %s10 = ssub.s32 1, %s8
  %s11 = scalar_select 0, %s10, %s8
  $region1: #{tpu_custom_call.1} parent=0
    #allocation2 [shape = 'u8[4096]{0}', space=vmem, size = 0x1000, scoped, tag = 'input window, operand 0, single buffered']
    #allocation3 [shape = 's32[1]{0}', space=sflag, size = 0x4, scoped, tag = 'scoped memory for tpu_custom_call.1']
    #allocation4 [shape = 'u8[4096]{0}', space=vmem, size = 0x1000, scoped, tag = 'input window, operand 1, single buffered']
    #allocation5 [shape = 's32[1]{0}', space=sflag, size = 0x4, scoped, tag = 'scoped memory for tpu_custom_call.1']
    %12 = vsyncpa [#allocation3], 0
    %13 = vsyncpa [#allocation5], 0
    // Predicated region
    $region2: #{tpu_custom_call.1} parent=1 // pred_check
      _
    $region3: #{tpu_custom_call.1} parent=1 // pred_check_branch
      %15 = sbr.rel (0) target = $region5
    $region4: #{tpu_custom_call.1} parent=1 // pred_region
      %17 = vsyncadd [#allocation3], 0
      %s19 = sshll.u32 %s0, 4
      %s20 = int_to_ptr.hbm [resolvable:$true] %s19
      %s21 = sshll.u32 [#allocation2], 4
      %s22 = int_to_ptr.vmem [resolvable:$true] %s21
      %24 = dma.hbm_to_vmem [thread:$0]  %s20, 128, %s22, [#allocation3]
    $region5: #{tpu_custom_call.1} parent=1 // pred_fallthru
      _
    // Predicated region
    $region6: #{tpu_custom_call.1} parent=1 // pred_check
      _
    $region7: #{tpu_custom_call.1} parent=1 // pred_check_branch
      %26 = sbr.rel (0) target = $region9
    $region8: #{tpu_custom_call.1} parent=1 // pred_region
      %28 = vsyncadd [#allocation5], 0
      %s29 = sshll.u32 %s1, 4
      %s30 = int_to_ptr.hbm [resolvable:$true] %s29
      %s31 = sshll.u32 [#allocation4], 4
      %s32 = int_to_ptr.vmem [resolvable:$true] %s31
      %37 = dma.hbm_to_vmem [thread:$0]  %s30, 128, %s32, [#allocation5], 64, 64, 4
    $region9: #{tpu_custom_call.1} parent=1 // pred_fallthru
      _
    // Predicated region
    $region10: #{tpu_custom_call.1} parent=1 // pred_check
      _
    $region11: #{tpu_custom_call.1} parent=1 // pred_check_branch
      %39 = sbr.rel (0) target = $region13
    $region12: #{tpu_custom_call.1} parent=1 // pred_region
      _
    $region13: #{tpu_custom_call.1} parent=1 // pred_fallthru
      _
    // Predicated region
    $region14: #{tpu_custom_call.1} parent=1 // pred_check
      _
    $region15: #{tpu_custom_call.1} parent=1 // pred_check_branch
      %41 = sbr.rel (0) target = $region17
    $region16: #{tpu_custom_call.1} parent=1 // pred_region
      _
    $region17: #{tpu_custom_call.1} parent=1 // pred_fallthru
      _
    // Predicated region
    $region18: #{tpu_custom_call.1} parent=1 // pred_check
      _
    $region19: #{tpu_custom_call.1} parent=1 // pred_check_branch
      %43 = sbr.rel (0) target = $region21
    $region20: #{tpu_custom_call.1} parent=1 // pred_region
      _
    $region21: #{tpu_custom_call.1} parent=1 // pred_fallthru
      _
    // Predicated region
    $region22: #{tpu_custom_call.1} parent=1 // pred_check
      _
    $region23: #{tpu_custom_call.1} parent=1 // pred_check_branch
      %45 = sbr.rel (0) target = $region25
    $region24: #{tpu_custom_call.1} parent=1 // pred_region
      _
    $region25: #{tpu_custom_call.1} parent=1 // pred_fallthru
      _
    // Predicated region
    $region26: #{tpu_custom_call.1} parent=1 // pred_check
      _
    $region27: #{tpu_custom_call.1} parent=1 // pred_check_branch
      %47 = sbr.rel (0) target = $region29
    $region28: #{tpu_custom_call.1} parent=1 // pred_region
      _
    $region29: #{tpu_custom_call.1} parent=1 // pred_fallthru
      _
    // Predicated region
    $region30: #{tpu_custom_call.1} parent=1 // pred_check
      _
    $region31: #{tpu_custom_call.1} parent=1 // pred_check_branch
      %49 = sbr.rel (0) target = $region33
    $region32: #{tpu_custom_call.1} parent=1 // pred_region
      %51 = dma.done [#allocation3], 128
    $region33: #{tpu_custom_call.1} parent=1 // pred_fallthru
      _
    // Predicated region
    $region34: #{tpu_custom_call.1} parent=1 // pred_check
      _
    $region35: #{tpu_custom_call.1} parent=1 // pred_check_branch
      %53 = sbr.rel (0) target = $region37
    $region36: #{tpu_custom_call.1} parent=1 // pred_region
      %55 = dma.done [#allocation5], 128
    $region37: #{tpu_custom_call.1} parent=1 // pred_fallthru
      _
    %v57 = vld [vmem:[#allocation2] sm:$0xff]
    %v58 = vpack.c.bf16 %v57, %v57
    %v59 = vld [vmem:[#allocation4] sm:$0xf]
    %v60 = vld [vmem:[#allocation4 + $0x4] sm:$0xf]
    %v61 = vld [vmem:[%s2] sm:$0x1]
    %v63 = vperm.slane %v61, 0
    %v67 = vunpack.c.l.b16 %v59
    %v68 = vunpack.c.l.b16 %v60
    %v69 = vpack.c.b16 %v68, %v67
    %vm71 = vcmask 130048
    %v73 = vsel %vm71, %v58, 0
    %75 = vmatpush.bf16.msra.mxu0 0
    %76 = vmatpush.bf16.msra.mxu0 0
    %77 = vmatpush.bf16.msra.mxu0 0
    %78 = vmatpush.bf16.msra.mxu0 0
    %79 = vmatpush.bf16.msra.mxu0 0
    %80 = vmatpush.bf16.msra.mxu0 0
    %81 = vmatpush.bf16.msra.mxu0 0
    %82 = vmatpush.bf16.msra.mxu0 %v69
    %83 = vmatmul.bf16.gmra.mxu0 %v73
    %v84 = vpop.f32.mrf.mxu0
    %v85 = vadd.f32 %v63, %v84
    %v86 = vpop.f32.mrf.mxu0
    %87 = vdwg.mxu0
    %v88 = vmax.f32 %v85, 0.0
    %v89 = vpack.c.bf16 %v88, %v88
    %v90 = vld [vmem:[%s3] sm:$0xff]
    %v91 = vld [vmem:[%s3 + $0x8] sm:$0xff]
    %v92 = vld [vmem:[%s3 + $0x10] sm:$0xff]
    %v93 = vld [vmem:[%s3 + $0x18] sm:$0xff]
    %v94 = vld [vmem:[%s3 + $0x20] sm:$0xff]
    %v95 = vld [vmem:[%s3 + $0x28] sm:$0xff]
    %v96 = vld [vmem:[%s3 + $0x30] sm:$0xff]
    %v97 = vld [vmem:[%s3 + $0x38] sm:$0xff]
    %v98 = vld [vmem:[%s3 + $0x40] sm:$0xff]
    %v99 = vld [vmem:[%s3 + $0x48] sm:$0xff]
    %v100 = vld [vmem:[%s3 + $0x50] sm:$0xff]
    %v101 = vld [vmem:[%s3 + $0x58] sm:$0xff]
    %v102 = vld [vmem:[%s3 + $0x60] sm:$0xff]
    %v103 = vld [vmem:[%s3 + $0x68] sm:$0xff]
    %v104 = vld [vmem:[%s3 + $0x70] sm:$0xff]
    %v105 = vld [vmem:[%s3 + $0x78] sm:$0xff]
    %v106 = vld [vmem:[%s4] sm:$0x3]
    %v108 = vperm.slane %v106, 0
    %v109 = vperm.slane %v106, 1
    %v128 = vunpack.c.l.b16 %v90
    %v129 = vunpack.c.h.b16 %v90
    %v130 = vunpack.c.l.b16 %v91
    %v131 = vunpack.c.h.b16 %v91
    %v132 = vunpack.c.l.b16 %v92
    %v133 = vunpack.c.h.b16 %v92
    %v134 = vunpack.c.l.b16 %v93
    %v135 = vunpack.c.h.b16 %v93
    %v136 = vunpack.c.l.b16 %v94
    %v137 = vunpack.c.h.b16 %v94
    %v138 = vunpack.c.l.b16 %v95
    %v139 = vunpack.c.h.b16 %v95
    %v140 = vunpack.c.l.b16 %v96
    %v141 = vunpack.c.h.b16 %v96
    %v142 = vunpack.c.l.b16 %v97
    %v143 = vunpack.c.h.b16 %v97
    %v144 = vunpack.c.l.b16 %v98
    %v145 = vunpack.c.h.b16 %v98
    %v146 = vunpack.c.l.b16 %v99
    %v147 = vunpack.c.h.b16 %v99
    %v148 = vunpack.c.l.b16 %v100
    %v149 = vunpack.c.h.b16 %v100
    %v150 = vunpack.c.l.b16 %v101
    %v151 = vunpack.c.h.b16 %v101
    %v152 = vunpack.c.l.b16 %v102
    %v153 = vunpack.c.h.b16 %v102
    %v154 = vunpack.c.l.b16 %v103
    %v155 = vunpack.c.h.b16 %v103
    %v156 = vunpack.c.l.b16 %v104
    %v157 = vunpack.c.h.b16 %v104
    %v158 = vunpack.c.l.b16 %v105
    %v159 = vunpack.c.h.b16 %v105
    %v160 = vpack.c.b16 %v130, %v128
    %v161 = vpack.c.b16 %v131, %v129
    %v162 = vpack.c.b16 %v134, %v132
    %v163 = vpack.c.b16 %v135, %v133
    %v164 = vpack.c.b16 %v138, %v136
    %v165 = vpack.c.b16 %v139, %v137
    %v166 = vpack.c.b16 %v142, %v140
    %v167 = vpack.c.b16 %v143, %v141
    %v168 = vpack.c.b16 %v146, %v144
    %v169 = vpack.c.b16 %v147, %v145
    %v170 = vpack.c.b16 %v150, %v148
    %v171 = vpack.c.b16 %v151, %v149
    %v172 = vpack.c.b16 %v154, %v152
    %v173 = vpack.c.b16 %v155, %v153
    %v174 = vpack.c.b16 %v158, %v156
    %v175 = vpack.c.b16 %v159, %v157
    %192 = vmatpush.bf16.msra.mxu0 %v174
    %193 = vmatpush.bf16.msra.mxu0 %v172
    %194 = vmatpush.bf16.msra.mxu0 %v170
    %195 = vmatpush.bf16.msra.mxu0 %v168
    %196 = vmatpush.bf16.msra.mxu0 %v166
    %197 = vmatpush.bf16.msra.mxu0 %v164
    %198 = vmatpush.bf16.msra.mxu0 %v162
    %199 = vmatpush.bf16.msra.mxu0 %v160
    %200 = vmatmul.bf16.gmra.mxu0 %v89
    %v201 = vpop.f32.mrf.mxu0
    %v202 = vadd.f32 %v108, %v201
    %v203 = vpop.f32.mrf.mxu0
    %204 = vdwg.mxu0
    %205 = vmatpush.bf16.msra.mxu0 %v175
    %206 = vmatpush.bf16.msra.mxu0 %v173
    %207 = vmatpush.bf16.msra.mxu0 %v171
    %208 = vmatpush.bf16.msra.mxu0 %v169
    %209 = vmatpush.bf16.msra.mxu0 %v167
    %210 = vmatpush.bf16.msra.mxu0 %v165
    %211 = vmatpush.bf16.msra.mxu0 %v163
    %212 = vmatpush.bf16.msra.mxu0 %v161
    %213 = vmatmul.bf16.gmra.mxu0 %v89
    %v214 = vpop.f32.mrf.mxu0
    %v215 = vadd.f32 %v109, %v214
    %v216 = vpop.f32.mrf.mxu0
    %217 = vdwg.mxu0
    %v218 = vmax.f32 %v202, 0.0
    %v219 = vmax.f32 %v215, 0.0
    %v220 = vpack.c.bf16 %v218, %v218
    %v221 = vpack.c.bf16 %v219, %v219
    %v222 = vld [vmem:[%s5] sm:$0xf]
    %v223 = vld [vmem:[%s5 + $0x4] sm:$0xf]
    %v224 = vld [vmem:[%s5 + $0x8] sm:$0xf]
    %v225 = vld [vmem:[%s5 + $0xc] sm:$0xf]
    %v226 = vld [vmem:[%s5 + $0x10] sm:$0xf]
    %v227 = vld [vmem:[%s5 + $0x14] sm:$0xf]
    %v228 = vld [vmem:[%s5 + $0x18] sm:$0xf]
    %v229 = vld [vmem:[%s5 + $0x1c] sm:$0xf]
    %v230 = vld [vmem:[%s5 + $0x20] sm:$0xf]
    %v231 = vld [vmem:[%s5 + $0x24] sm:$0xf]
    %v232 = vld [vmem:[%s5 + $0x28] sm:$0xf]
    %v233 = vld [vmem:[%s5 + $0x2c] sm:$0xf]
    %v234 = vld [vmem:[%s5 + $0x30] sm:$0xf]
    %v235 = vld [vmem:[%s5 + $0x34] sm:$0xf]
    %v236 = vld [vmem:[%s5 + $0x38] sm:$0xf]
    %v237 = vld [vmem:[%s5 + $0x3c] sm:$0xf]
    %v238 = vld [vmem:[%s5 + $0x40] sm:$0xf]
    %v239 = vld [vmem:[%s5 + $0x44] sm:$0xf]
    %v240 = vld [vmem:[%s5 + $0x48] sm:$0xf]
    %v241 = vld [vmem:[%s5 + $0x4c] sm:$0xf]
    %v242 = vld [vmem:[%s5 + $0x50] sm:$0xf]
    %v243 = vld [vmem:[%s5 + $0x54] sm:$0xf]
    %v244 = vld [vmem:[%s5 + $0x58] sm:$0xf]
    %v245 = vld [vmem:[%s5 + $0x5c] sm:$0xf]
    %v246 = vld [vmem:[%s5 + $0x60] sm:$0xf]
    %v247 = vld [vmem:[%s5 + $0x64] sm:$0xf]
    %v248 = vld [vmem:[%s5 + $0x68] sm:$0xf]
    %v249 = vld [vmem:[%s5 + $0x6c] sm:$0xf]
    %v250 = vld [vmem:[%s5 + $0x70] sm:$0xf]
    %v251 = vld [vmem:[%s5 + $0x74] sm:$0xf]
    %v252 = vld [vmem:[%s5 + $0x78] sm:$0xf]
    %v253 = vld [vmem:[%s5 + $0x7c] sm:$0xf]
    %v254 = vld [vmem:[%s6] sm:$0x1]
    %v256 = vperm.slane %v254, 0
    %v290 = vunpack.c.l.b16 %v222
    %v291 = vunpack.c.l.b16 %v223
    %v292 = vunpack.c.l.b16 %v224
    %v293 = vunpack.c.l.b16 %v225
    %v294 = vunpack.c.l.b16 %v226
    %v295 = vunpack.c.l.b16 %v227
    %v296 = vunpack.c.l.b16 %v228
    %v297 = vunpack.c.l.b16 %v229
    %v298 = vunpack.c.l.b16 %v230
    %v299 = vunpack.c.l.b16 %v231
    %v300 = vunpack.c.l.b16 %v232
    %v301 = vunpack.c.l.b16 %v233
    %v302 = vunpack.c.l.b16 %v234
    %v303 = vunpack.c.l.b16 %v235
    %v304 = vunpack.c.l.b16 %v236
    %v305 = vunpack.c.l.b16 %v237
    %v306 = vunpack.c.l.b16 %v238
    %v307 = vunpack.c.l.b16 %v239
    %v308 = vunpack.c.l.b16 %v240
    %v309 = vunpack.c.l.b16 %v241
    %v310 = vunpack.c.l.b16 %v242
    %v311 = vunpack.c.l.b16 %v243
    %v312 = vunpack.c.l.b16 %v244
    %v313 = vunpack.c.l.b16 %v245
    %v314 = vunpack.c.l.b16 %v246
    %v315 = vunpack.c.l.b16 %v247
    %v316 = vunpack.c.l.b16 %v248
    %v317 = vunpack.c.l.b16 %v249
    %v318 = vunpack.c.l.b16 %v250
    %v319 = vunpack.c.l.b16 %v251
    %v320 = vunpack.c.l.b16 %v252
    %v321 = vunpack.c.l.b16 %v253
    %v322 = vpack.c.b16 %v291, %v290
    %v323 = vpack.c.b16 %v293, %v292
    %v324 = vpack.c.b16 %v295, %v294
    %v325 = vpack.c.b16 %v297, %v296
    %v326 = vpack.c.b16 %v299, %v298
    %v327 = vpack.c.b16 %v301, %v300
    %v328 = vpack.c.b16 %v303, %v302
    %v329 = vpack.c.b16 %v305, %v304
    %v330 = vpack.c.b16 %v307, %v306
    %v331 = vpack.c.b16 %v309, %v308
    %v332 = vpack.c.b16 %v311, %v310
    %v333 = vpack.c.b16 %v313, %v312
    %v334 = vpack.c.b16 %v315, %v314
    %v335 = vpack.c.b16 %v317, %v316
    %v336 = vpack.c.b16 %v319, %v318
    %v337 = vpack.c.b16 %v321, %v320
    %354 = vmatpush.bf16.msra.mxu0 %v329
    %355 = vmatpush.bf16.msra.mxu0 %v328
    %356 = vmatpush.bf16.msra.mxu0 %v327
    %357 = vmatpush.bf16.msra.mxu0 %v326
    %358 = vmatpush.bf16.msra.mxu0 %v325
    %359 = vmatpush.bf16.msra.mxu0 %v324
    %360 = vmatpush.bf16.msra.mxu0 %v323
    %361 = vmatpush.bf16.msra.mxu0 %v322
    %362 = vmatmul.bf16.gmra.mxu0 %v220
    %v363 = vpop.f32.mrf.mxu0
    %v364 = vadd.f32 %v256, %v363
    %v365 = vpop.f32.mrf.mxu0
    %366 = vdwg.mxu0
    %367 = vmatpush.bf16.msra.mxu0 %v337
    %368 = vmatpush.bf16.msra.mxu0 %v336
    %369 = vmatpush.bf16.msra.mxu0 %v335
    %370 = vmatpush.bf16.msra.mxu0 %v334
    %371 = vmatpush.bf16.msra.mxu0 %v333
    %372 = vmatpush.bf16.msra.mxu0 %v332
    %373 = vmatpush.bf16.msra.mxu0 %v331
    %374 = vmatpush.bf16.msra.mxu0 %v330
    %375 = vmatmul.bf16.gmra.mxu0 %v221
    %v376 = vpop.f32.mrf.mxu0
    %v377 = vadd.f32 %v364, %v376
    %v378 = vpop.f32.mrf.mxu0
    %379 = vdwg.mxu0
    %vm380 = vcmask 31744
    %381 = vst.msk [vmem:[%s7] sm:$0xff] %vm380, %v377
    // Predicated region
    $region38: #{tpu_custom_call.1} parent=1 // pred_check
      _
    $region39: #{tpu_custom_call.1} parent=1 // pred_check_branch
      %383 = sbr.rel (0) target = $region41
    $region40: #{tpu_custom_call.1} parent=1 // pred_region
      _
    $region41: #{tpu_custom_call.1} parent=1 // pred_fallthru
      _
    // Predicated region
    $region42: #{tpu_custom_call.1} parent=1 // pred_check
      _
    $region43: #{tpu_custom_call.1} parent=1 // pred_check_branch
      %385 = sbr.rel (0) target = $region45
    $region44: #{tpu_custom_call.1} parent=1 // pred_region
      _
    $region45: #{tpu_custom_call.1} parent=1 // pred_fallthru
      _
    %386 = vsyncpa [#allocation3], 1
    %387 = vsyncpa [#allocation5], 1

</llo_original>
